<compile_context>
chip_gen: v6e
topology: v6e:2x2x1
jax: 0.10.0
libtpu: 0.0.40
codegen_flags: <defaults>
</compile_context>

<pallas_src>
from functools import partial

import numpy as np
import jax
import jax.numpy as jnp
from jax.experimental import pallas as pl
from jax.experimental.pallas import tpu as pltpu


# ----------------------------------------------------------------------------
# Filter-bank construction (deterministic parameter setup, mirrors PyTorch)
# ----------------------------------------------------------------------------
def _to_mel(hz):
    return 2595.0 * np.log10(1.0 + hz / 700.0)


def _to_hz(mel):
    return 700.0 * (10.0 ** (mel / 2595.0) - 1.0)


def make_sinc_filters(out_channels, kernel_size, sample_rate=16000, freq_scale="Mel"):
    """Reproduce SincConv.__init__ + the filter build inside SincConv.forward."""
    C = out_channels + 1                       # self.out_channels
    K = kernel_size + 1 if kernel_size % 2 == 0 else kernel_size

    NFFT = 512
    f = sample_rate // 2 * np.linspace(0, 1, int(NFFT / 2) + 1)
    if freq_scale == "Mel":
        fmel = _to_mel(f)
        filbandwidthsmel = np.linspace(np.min(fmel), np.max(fmel), C + 2)
        filbandwidthsf = _to_hz(filbandwidthsmel)
        freq = filbandwidthsf[:C]
    elif freq_scale == "Inverse-mel":
        fmel = _to_mel(f)
        filbandwidthsmel = np.linspace(np.min(fmel), np.max(fmel), C + 2)
        mel = _to_hz(filbandwidthsmel)[:C]
        freq = np.abs(np.flip(mel) - 1)
    else:
        filbandwidthsmel = np.linspace(np.min(f), np.max(f), C + 2)
        freq = filbandwidthsmel[:C]

    hsupp = np.arange(-(K - 1) / 2, (K - 1) / 2 + 1)
    band_pass = np.zeros((C - 1, K), dtype=np.float64)
    ham = np.hamming(K)
    for i in range(len(freq) - 1):
        fmin, fmax = freq[i], freq[i + 1]
        hHigh = 2 * fmax / sample_rate * np.sinc(2 * fmax * hsupp / sample_rate)
        hLow = 2 * fmin / sample_rate * np.sinc(2 * fmin * hsupp / sample_rate)
        band_pass[i, :] = ham * (hHigh - hLow)

    # torch.zeros default dtype is float32; values are truncated on store
    return band_pass.astype(np.float32), K


# ----------------------------------------------------------------------------
# Helpers
# ----------------------------------------------------------------------------
def _round_up(x, m):
    return ((x + m - 1) // m) * m


# ----------------------------------------------------------------------------
# Pallas kernel: one MXU matmul per (batch, L_out-tile)
# ----------------------------------------------------------------------------
def sinc_conv_kernel(x_ref, w_ref, o_ref, *, win):
    # x_ref: (1, 1, L_in)   w_ref: (C_pad, K_pad)   o_ref: (1, C_pad, TL)
    k_pad = w_ref.shape[1]
    tl = o_ref.shape[2]

    # 128-aligned window start of this output tile inside the resident signal.
    start = pl.multiple_of(pl.program_id(1) * tl, 128)

    # Overlapping input window for this tile (length `win` = TL + 128-multiple,
    # so the load is whole, unmasked vregs).
    x_win = x_ref[:, :, pl.ds(start, win)][0]            # (1, win)

    # im2col: row k holds x[start + k : start + k + TL]. Taps k >= K multiply
    # zero filter weights, so the (zero-padded) extra rows contribute nothing.
    xcol = jnp.concatenate([x_win[:, k:k + tl] for k in range(k_pad)], axis=0)  # (K_pad, TL)

    # Single MXU pass per tile; accumulate in f32.
    o_ref[0] = jnp.dot(
        w_ref[...], xcol,
        preferred_element_type=jnp.float32,
        precision=jax.lax.Precision.HIGHEST,
    ).astype(o_ref.dtype)


def sinc_conv(x, filters, stride=1, padding=0, dilation=1, tile_l=2048):
    """x: (N, 1, L) float32, filters: (C_out, K) float32 -> (N, C_out, L_out)."""
    # TODO(synk): only the module defaults stride=1, dilation=1 are implemented.
    assert stride == 1 and dilation == 1, "only default stride/dilation supported"
    n, c_in, length = x.shape
    assert c_in == 1, "SincConv only supports 1 input channel."
    c_out, k_size = filters.shape
    assert k_size % 2 == 1, "pass the (odd) kernel size returned by make_sinc_filters"

    l_sig = length + 2 * padding               # conv-padded signal length
    l_out = l_sig - k_size + 1
    assert l_out > 0, "signal shorter than kernel"

    # ---- host-side padding to TPU-friendly shapes ---------------------------
    c_pad = _round_up(c_out, 8)                # sublane-aligned output channels
    # TODO(synk): bump k_pad to a 128-multiple for full MXU passes on v5e when
    # K is large (e.g. 129); 8-alignment is enough for correctness/layout.
    k_pad = _round_up(k_size, 8)

    tl = min(_round_up(tile_l, 128), _round_up(l_out, 128))   # lane-dense tile
    nt = pl.cdiv(l_out, tl)
    l_out_pad = nt * tl
    win_pad = _round_up(k_pad, 128)            # window overhang, 128-multiple
    win = tl + win_pad                         # in-kernel window length
    l_in = l_out_pad + win_pad                 # resident signal length (mult of 128)

    w_pad = jnp.zeros((c_pad, k_pad), filters.dtype).at[:c_out, :k_size].set(filters)
    # One pad op covers both the conv zero-padding and the alignment tail.
    x_pad = jnp.pad(x, ((0, 0), (0, 0), (padding, l_in - length - padding)))

    cost = pl.CostEstimate(
        flops=2 * n * c_out * k_size * l_out,
        transcendentals=0,
        bytes_accessed=4 * (x.size + filters.size + n * c_out * l_out),
    )

    out = pl.pallas_call(
        partial(sinc_conv_kernel, win=win),
        out_shape=jax.ShapeDtypeStruct((n, c_pad, l_out_pad), jnp.float32),
        grid=(n, nt),
        in_specs=[
            # Full per-batch signal resident in VMEM across all L_out tiles.
            pl.BlockSpec((1, 1, l_in), lambda b, j: (b, 0, 0)),
            pl.BlockSpec((c_pad, k_pad), lambda b, j: (0, 0)),
        ],
        out_specs=pl.BlockSpec((1, c_pad, tl), lambda b, j: (b, 0, j)),
        compiler_params=pltpu.CompilerParams(
            dimension_semantics=("parallel", "parallel"),
        ),
        cost_estimate=cost,
    )(x_pad, w_pad)

    return out[:, :c_out, :l_out]


# ----------------------------------------------------------------------------
if __name__ == "__main__":
    # Small config consistent with the module: 1 input channel, 1-D signal.
    out_channels = 4          # -> 4 band-pass filters
    kernel_size = 7           # odd, stays 7
    sample_rate = 16000
    batch = 2
    seq_len = 300             # exercises multiple L_out tiles + a partial tail

    band_pass_np, K = make_sinc_filters(out_channels, kernel_size, sample_rate, "Mel")
    filters = jnp.asarray(band_pass_np)                      # (4, 7)

    key = jax.random.PRNGKey(0)
    x = jax.random.normal(key, (batch, 1, seq_len), dtype=jnp.float32)

    out = sinc_conv(x, filters, tile_l=128)   # small tile to exercise tiling
    out = jax.block_until_ready(out)

    # Pure numpy reference for the conv1d (stride=1, padding=0, dilation=1).
    x_np = np.asarray(x)
    l_out = seq_len - K + 1
    ref = np.zeros((batch, out_channels, l_out), dtype=np.float32)
    for b in range(batch):
        for t in range(l_out):
            ref[b, :, t] = (band_pass_np * x_np[b, 0, t:t + K]).sum(axis=1)

    np.testing.assert_allclose(np.asarray(out), ref, rtol=1e-3, atol=1e-5)
    assert out.shape == (batch, out_channels, l_out)
    print("KERNEL_OK")
</pallas_src>

<mosaic_0001>
module attributes {stable_mosaic.version = 11 : i64} {
  func.func @sinc_conv_kernel(%arg0: i32, %arg1: i32, %arg2: memref<1x1x512xf32, #tpu.memory_space<vmem>>, %arg3: memref<8x8xf32, #tpu.memory_space<vmem>>, %arg4: memref<1x8x128xf32, #tpu.memory_space<vmem>>) attributes {dimension_semantics = [#tpu.dimension_semantics<parallel>, #tpu.dimension_semantics<parallel>], iteration_bounds = array<i64: 2, 3>, scalar_prefetch = 0 : i64, scratch_operands = 0 : i64, tpu.core_type = #tpu.core_type<tc>, window_params = [{transform_indices = @transform_0, window_bounds = array<i64: 1, 1, 512>}, {pipeline_mode = #tpu.pipeline_mode<synchronous>, transform_indices = @transform_1, window_bounds = array<i64: 8, 8>}, {transform_indices = @transform_2, window_bounds = array<i64: 1, 8, 128>}]} {
    %c128_i32 = arith.constant 128 : i32
    %0 = arith.muli %arg1, %c128_i32 : i32
    %1 = tpu.assume_multiple %0, 128 : i32
    %c0 = arith.constant 0 : index
    %c0_0 = arith.constant 0 : index
    %2 = arith.index_cast %1 : i32 to index
    %3 = vector.load %arg2[%c0, %c0_0, %2] : memref<1x1x512xf32, #tpu.memory_space<vmem>>, vector<1x1x256xf32>
    %4 = vector.shape_cast %3 : vector<1x1x256xf32> to vector<1x256xf32>
    %5 = vector.extract_strided_slice %4 {offsets = [0, 0], sizes = [1, 128], strides = [1, 1]} : vector<1x256xf32> to vector<1x128xf32>
    %6 = vector.extract_strided_slice %4 {offsets = [0, 1], sizes = [1, 128], strides = [1, 1]} : vector<1x256xf32> to vector<1x128xf32>
    %7 = vector.extract_strided_slice %4 {offsets = [0, 2], sizes = [1, 128], strides = [1, 1]} : vector<1x256xf32> to vector<1x128xf32>
    %8 = vector.extract_strided_slice %4 {offsets = [0, 3], sizes = [1, 128], strides = [1, 1]} : vector<1x256xf32> to vector<1x128xf32>
    %9 = vector.extract_strided_slice %4 {offsets = [0, 4], sizes = [1, 128], strides = [1, 1]} : vector<1x256xf32> to vector<1x128xf32>
    %10 = vector.extract_strided_slice %4 {offsets = [0, 5], sizes = [1, 128], strides = [1, 1]} : vector<1x256xf32> to vector<1x128xf32>
    %11 = vector.extract_strided_slice %4 {offsets = [0, 6], sizes = [1, 128], strides = [1, 1]} : vector<1x256xf32> to vector<1x128xf32>
    %12 = vector.extract_strided_slice %4 {offsets = [0, 7], sizes = [1, 128], strides = [1, 1]} : vector<1x256xf32> to vector<1x128xf32>
    %13 = tpu.concatenate %5, %6, %7, %8, %9, %10, %11, %12 in 0 : vector<1x128xf32>, vector<1x128xf32>, vector<1x128xf32>, vector<1x128xf32>, vector<1x128xf32>, vector<1x128xf32>, vector<1x128xf32>, vector<1x128xf32> -> vector<8x128xf32>
    %c0_1 = arith.constant 0 : index
    %c0_2 = arith.constant 0 : index
    %14 = vector.load %arg3[%c0_1, %c0_2] : memref<8x8xf32, #tpu.memory_space<vmem>>, vector<8x8xf32>
    %cst = arith.constant dense<0.000000e+00> : vector<8x128xf32>
    %15 = tpu.matmul %14, %13, %cst {dimension_numbers = #tpu.dot_dimension_numbers<[1], [0], [0], [1], [0, 0, 1, 1], [], []>, precision = #tpu.contract_precision<fp32>} : vector<8x8xf32>, vector<8x128xf32>, vector<8x128xf32> -> vector<8x128xf32>
    %c0_3 = arith.constant 0 : index
    %c0_4 = arith.constant 0 : index
    %c0_5 = arith.constant 0 : index
    %16 = vector.load %arg4[%c0_3, %c0_4, %c0_5] : memref<1x8x128xf32, #tpu.memory_space<vmem>>, vector<1x8x128xf32>
    %17 = vector.shape_cast %16 : vector<1x8x128xf32> to vector<8x128xf32>
    %18 = vector.shape_cast %15 : vector<8x128xf32> to vector<1x8x128xf32>
    tpu.vector_store %arg4[%c0_3, %c0_4, %c0_5], %18 {strides = array<i32>} : memref<1x8x128xf32, #tpu.memory_space<vmem>>, vector<1x8x128xf32>,
    return
  }
  func.func @transform_0(%arg0: i32, %arg1: i32) -> (i32, i32, i32) {
    %c0_i32 = arith.constant 0 : i32
    %c0_i32_0 = arith.constant 0 : i32
    %c0_i32_1 = arith.constant 0 : i32
    return %arg0, %c0_i32, %c0_i32_0 : i32, i32, i32
  }
  func.func @transform_1(%arg0: i32, %arg1: i32) -> (i32, i32) {
    %c0_i32 = arith.constant 0 : i32
    %c0_i32_0 = arith.constant 0 : i32
    %c0_i32_1 = arith.constant 0 : i32
    return %c0_i32, %c0_i32_0 : i32, i32
  }
  func.func @transform_2(%arg0: i32, %arg1: i32) -> (i32, i32, i32) {
    %c0_i32 = arith.constant 0 : i32
    %c0_i32_0 = arith.constant 0 : i32
    return %arg0, %c0_i32, %arg1 : i32, i32, i32
  }
}

</mosaic_0001>

<llo_original>
// kernel: tpu_custom_call.1
$region0: #{tpu_custom_call.1}
  #allocation0 [shape = 'u32[]', space=smem, size = 0x4, offset = 0x4, fixed_abs, tag = 'smem constant byte address 0x4 - core index']
  #allocation1 [shape = 'u32[144,128]{1,0:T(1,128)}', space=vmem, size = 0x12000, scoped, tag = 'internal scratch']
  %s0 = inlined_call_operand.hbm [shape: f32[2,1,512], index: 0, kind: input, shape index: {}]
  %s1 = inlined_call_operand.hbm [shape: f32[8,8], index: 1, kind: input, shape index: {}]
  %s2 = inlined_call_operand.hbm [shape: f32[2,8,384], index: 2, kind: output, shape index: {}]
  %s3 = sld [smem:[#allocation0]]
  $region49: #{tpu_custom_call.1} parent=0
    _
  %s5 = ssub.s32 1, %s3
  %s6 = scalar_select 0, %s5, %s3
  $region1: #{tpu_custom_call.1} parent=0
    #allocation2 [shape = 'u8[4096]{0}', space=vmem, size = 0x1000, scoped, tag = 'input window, operand 0']
    #allocation3 [shape = 's32[2]{0}', space=sflag, size = 0x8, scoped, tag = 'scoped memory for tpu_custom_call.1']
    #allocation4 [shape = 's32[2]{0}', space=sflag, size = 0x8, scoped, tag = 'scoped memory for tpu_custom_call.1']
    #allocation5 [shape = 'u8[4096]{0}', space=vmem, size = 0x1000, scoped, tag = 'input window, operand 1, single buffered']
    #allocation6 [shape = 's32[1]{0}', space=sflag, size = 0x4, scoped, tag = 'scoped memory for tpu_custom_call.1']
    #allocation7 [shape = 'u8[8192]{0}', space=vmem, size = 0x2000, scoped, tag = 'output window, operand 0']
    %7 = vsyncpa [#allocation3], 0
    %s8 = scalar_lea.sflag [#allocation3], 1
    %9 = vsyncpa %s8, 0
    %10 = vsyncpa [#allocation6], 0
    %11 = vsyncpa [#allocation4], 0
    %s12 = scalar_lea.sflag [#allocation4], 1
    %13 = vsyncpa %s12, 0
    loop: start=0, step=1, limit=8
    $region2: #{tpu_custom_call.1} parent=1 // loop_pre_header
      _
    $region3: #{tpu_custom_call.1} parent=1 // loop_header
      %s15 = sphi 0, %s19
      %p16 = scmp.ge.s32.totalorder %s15, 8
      %s22 = sphi 0, %s34
      %s23 = sphi 0, %s30
      %s24 = sphi 0, %s22
      %s25 = sphi 0, %s23
      %s26 = sphi 0, %s24
      %s27 = sphi 0, %s25
      %s37 = sphi 0, %s39
      %s40 = sphi 0, %s37
      %s41 = sphi 0, %s40
      %s57 = sphi 0, %s41
      %s61 = sphi 0, %s61
      %s63 = sphi 0, %s61
      %s64 = sphi 0, %s63
      %s78 = sphi 0, %s64
      %s86 = sphi 0, %s88
      %s89 = sphi 0, %s86
      %s90 = sphi 0, %s89
      %s106 = sphi 0, %s90
    $region4: #{tpu_custom_call.1} parent=1 // loop_header_branch
      %18 = sbr.rel (%p16) target = $region8
    $region5: #{tpu_custom_call.1} parent=1 // loop_body
      %s20 = ssub.s32 %s15, 1
      %s21 = ssub.s32 %s15, 2
      %s28 = sadd.s32 1, %s23
      %p29 = scmp.ge.s32.totalorder %s28, 3
      %s30 = scalar_select %p29, 0, %s28
      %s31 = sadd.s32 1, %s22
      %s32 = scalar_select %p29, %s31, %s22
      %p33 = scmp.ge.s32.totalorder %s32, 2
      %s34 = scalar_select %p33, 0, %s32
      %s35 = ssub.s32 %s22, %s34
      %p36 = scmp.eq.s32.totalorder %s35, 0
      %s38 = sadd.s32 %s37, 1
      %s39 = scalar_select %p36, %s37, %s38
      %p42 = pneg %p36
      %p43 = scmp.eq.s32.totalorder %s15, 5
      %p44 = por %p42, %p43
      %p45 = scmp.ne.s32.totalorder %s37, %s40
      %p46 = scmp.eq.s32.totalorder %s15, 0
      %p47 = por %p45, %p46
      %p48 = scmp.ne.s32.totalorder %s37, %s40
      %p49 = scmp.eq.s32.totalorder %s20, 5
      %p50 = por %p48, %p49
      %p51 = scmp.ne.s32.totalorder %s40, %s41
      %p52 = scmp.eq.s32.totalorder %s20, 0
      %p53 = por %p51, %p52
      %p54 = scmp.ne.s32.totalorder %s40, %s41
      %p55 = scmp.eq.s32.totalorder %s21, 5
      %p56 = por %p54, %p55
      %p58 = scmp.ne.s32.totalorder %s41, %s57
      %p59 = scmp.eq.s32.totalorder %s21, 0
      %p60 = por %p58, %p59
      %s62 = sadd.s32 %s61, 1
      %p65 = scmp.eq.s32.totalorder %s15, 5
      %p66 = scmp.ne.s32.totalorder %s61, %s63
      %p67 = scmp.eq.s32.totalorder %s15, 0
      %p68 = por %p66, %p67
      %p69 = scmp.ne.s32.totalorder %s61, %s63
      %p70 = scmp.eq.s32.totalorder %s20, 5
      %p71 = por %p69, %p70
      %p72 = scmp.ne.s32.totalorder %s63, %s64
      %p73 = scmp.eq.s32.totalorder %s20, 0
      %p74 = por %p72, %p73
      %p75 = scmp.ne.s32.totalorder %s63, %s64
      %p76 = scmp.eq.s32.totalorder %s21, 5
      %p77 = por %p75, %p76
      %p79 = scmp.ne.s32.totalorder %s64, %s78
      %p80 = scmp.eq.s32.totalorder %s21, 0
      %p81 = por %p79, %p80
      %s82 = ssub.s32 %s22, %s34
      %s83 = ssub.s32 %s23, %s30
      %s84 = sor.u32 %s82, %s83
      %p85 = scmp.eq.s32.totalorder %s84, 0
      %s87 = sadd.s32 %s86, 1
      %s88 = scalar_select %p85, %s86, %s87
      %p91 = pneg %p85
      %p92 = scmp.eq.s32.totalorder %s15, 5
      %p93 = por %p91, %p92
      %p94 = scmp.ne.s32.totalorder %s86, %s89
      %p95 = scmp.eq.s32.totalorder %s15, 0
      %p96 = por %p94, %p95
      %p97 = scmp.ne.s32.totalorder %s86, %s89
      %p98 = scmp.eq.s32.totalorder %s20, 5
      %p99 = por %p97, %p98
      %p100 = scmp.ne.s32.totalorder %s89, %s90
      %p101 = scmp.eq.s32.totalorder %s20, 0
      %p102 = por %p100, %p101
      %p103 = scmp.ne.s32.totalorder %s89, %s90
      %p104 = scmp.eq.s32.totalorder %s21, 5
      %p105 = por %p103, %p104
      %p107 = scmp.ne.s32.totalorder %s90, %s106
      %p108 = scmp.eq.s32.totalorder %s21, 0
      %p109 = por %p107, %p108
      %p110 = scmp.le.s32.totalorder 1, %s15
      %p111 = scmp.lt.s32.totalorder %s15, 7
      %p112 = pnand %p110, %p111
      %p113 = pneg %p112
      // Predicated region
      $region9: #{tpu_custom_call.1} parent=5 // pred_check
        _
      $region10: #{tpu_custom_call.1} parent=5 // pred_check_branch
        %115 = sbr.rel (%p112) target = $region12
      $region11: #{tpu_custom_call.1} parent=5 // pred_region
        %s116 = ssub.s32 %s15, 1
        // Predicated region
        $region13: #{tpu_custom_call.1} parent=11 // pred_check
          %p117 = pneg %p74
        $region14: #{tpu_custom_call.1} parent=11 // pred_check_branch
          %119 = sbr.rel (%p117) target = $region16
        $region15: #{tpu_custom_call.1} parent=11 // pred_region
          %s121 = ssub.s32 128, 128
          %122 = vsyncadd [#allocation6], %s121
          %s124 = sshll.u32 [#allocation5], 4
          %s125 = int_to_ptr.vmem [resolvable:$true] %s124
          %127 = dma.hbm_to_vmem [thread:$0]  %s1, 128, %s125, [#allocation6]
        $region16: #{tpu_custom_call.1} parent=11 // pred_fallthru
          _
      $region12: #{tpu_custom_call.1} parent=5 // pred_fallthru
        _
      %p128 = scmp.lt.s32.totalorder %s15, 6
      // Predicated region
      $region17: #{tpu_custom_call.1} parent=5 // pred_check
        %p129 = pneg %p128
      $region18: #{tpu_custom_call.1} parent=5 // pred_check_branch
        %131 = sbr.rel (%p129) target = $region20
      $region19: #{tpu_custom_call.1} parent=5 // pred_region
        // Predicated region
        $region21: #{tpu_custom_call.1} parent=19 // pred_check
          %p132 = pneg %p47
        $region22: #{tpu_custom_call.1} parent=19 // pred_check_branch
          %134 = sbr.rel (%p132) target = $region24
        $region23: #{tpu_custom_call.1} parent=19 // pred_region
          %s135 = sand.u32 %s37, 1
          %s136 = scalar_lea.sflag [#allocation3], %s135
          %s137 = sand.u32 %s37, 1
          %s138 = smul.addr %s137, 4
          %s139 = scalar_lea.vmem [#allocation2], %s138
          %s141 = ssub.s32 64, 64
          %142 = vsyncadd %s136, %s141
          %s143 = smul.addr %s22, 4
          %s144 = smul.addr %s143, 16
          %s145 = scalar_lea.hbm %s0, %s144
          %s147 = sshll.u32 %s139, 4
          %s148 = int_to_ptr.vmem [resolvable:$true] %s147
          %150 = dma.hbm_to_vmem [thread:$0]  %s145, 64, %s148, %s136
        $region24: #{tpu_custom_call.1} parent=19 // pred_fallthru
          _
      $region20: #{tpu_custom_call.1} parent=5 // pred_fallthru
        _
      %p151 = scmp.le.s32.totalorder 1, %s15
      %p152 = scmp.lt.s32.totalorder %s15, 7
      %p153 = pnand %p151, %p152
      %p154 = pneg %p153
      // Predicated region
      $region25: #{tpu_custom_call.1} parent=5 // pred_check
        _
      $region26: #{tpu_custom_call.1} parent=5 // pred_check_branch
        %156 = sbr.rel (%p153) target = $region28
      $region27: #{tpu_custom_call.1} parent=5 // pred_region
        %s157 = ssub.s32 %s15, 1
        %s158 = sand.u32 %s40, 1
        %s159 = scalar_lea.sflag [#allocation3], %s158
        %s160 = sand.u32 %s40, 1
        %s161 = smul.addr %s160, 4
        %s162 = scalar_lea.vmem [#allocation2], %s161
        // Predicated region
        $region29: #{tpu_custom_call.1} parent=27 // pred_check
          %p163 = pneg %p53
        $region30: #{tpu_custom_call.1} parent=27 // pred_check_branch
          %165 = sbr.rel (%p163) target = $region32
        $region31: #{tpu_custom_call.1} parent=27 // pred_region
          %166 = dma.done %s159, 64
        $region32: #{tpu_custom_call.1} parent=27 // pred_fallthru
          _
        // Predicated region
        $region33: #{tpu_custom_call.1} parent=27 // pred_check
          %p167 = pneg %p74
        $region34: #{tpu_custom_call.1} parent=27 // pred_check_branch
          %169 = sbr.rel (%p167) target = $region36
        $region35: #{tpu_custom_call.1} parent=27 // pred_region
          %170 = dma.done [#allocation6], 128
        $region36: #{tpu_custom_call.1} parent=27 // pred_fallthru
          _
        %s171 = sand.u32 %s40, 1
        %s172 = scalar_lea.sflag [#allocation3], %s171
        %s173 = sand.u32 %s40, 1
        %s174 = smul.addr %s173, 4
        %s175 = scalar_lea.vmem [#allocation2], %s174
        %p176 = pneg %p53
        %p177 = pneg %p50
        %p178 = pneg %p74
        %p179 = pneg %p71
        %p180 = pneg %p102
        %p181 = pneg %p99
        %s182 = sand.u32 %s89, 1
        %s183 = scalar_lea.sflag [#allocation4], %s182
        %s184 = sand.u32 %s89, 1
        %s185 = smul.addr %s184, 8
        %s186 = scalar_lea.vmem [#allocation7], %s185
        %s187 = smul.u32 %s25, 128
        %s188 = sshra.s32 %s187, 7
        %s189 = sand.u32 %s187, 127
        %s190 = scalar_lea.vmem %s162, %s188 [#allocation2]
        %v191 = vld [vmem:[%s190] sm:$0x3]
        %v193 = vlaneseq
        %v194 = vshrl.u32 %v193, 7
        %v195 = vsub.s32 0, %v194
        %v196 = vrot.slane %v191, %v195
        %v197 = vlaneseq
        %v198 = vshrl.u32 %v197, 7
        %v199 = vsub.s32 1, %v198
        %v200 = vrot.slane %v191, %v199
        %201 = vrot.lane.b32.xlu0 %v196, 127
        %v202 = vpop.permute.xlu0 %201
        %203 = vrot.lane.b32.xlu0 %v200, 127
        %v204 = vpop.permute.xlu0 %203
        %vm205 = vcmask 1039360
        %v206 = vsel %vm205, %v202, %v204
        %208 = vrot.lane.b32.xlu0 %v196, 126
        %v209 = vpop.permute.xlu0 %208
        %210 = vrot.lane.b32.xlu0 %v200, 126
        %v211 = vpop.permute.xlu0 %210
        %vm212 = vcmask 1031168
        %v213 = vsel %vm212, %v209, %v211
        %215 = vrot.lane.b32.xlu0 %v196, 125
        %v216 = vpop.permute.xlu0 %215
        %217 = vrot.lane.b32.xlu0 %v200, 125
        %v218 = vpop.permute.xlu0 %217
        %vm219 = vcmask 1022976
        %v220 = vsel %vm219, %v216, %v218
        %222 = vrot.lane.b32.xlu0 %v196, 124
        %v223 = vpop.permute.xlu0 %222
        %224 = vrot.lane.b32.xlu0 %v200, 124
        %v225 = vpop.permute.xlu0 %224
        %vm226 = vcmask 1014784
        %v227 = vsel %vm226, %v223, %v225
        %229 = vrot.lane.b32.xlu0 %v196, 123
        %v230 = vpop.permute.xlu0 %229
        %231 = vrot.lane.b32.xlu0 %v200, 123
        %v232 = vpop.permute.xlu0 %231
        %vm233 = vcmask 1006592
        %v234 = vsel %vm233, %v230, %v232
        %236 = vrot.lane.b32.xlu0 %v196, 122
        %v237 = vpop.permute.xlu0 %236
        %238 = vrot.lane.b32.xlu0 %v200, 122
        %v239 = vpop.permute.xlu0 %238
        %vm240 = vcmask 998400
        %v241 = vsel %vm240, %v237, %v239
        %243 = vrot.lane.b32.xlu0 %v196, 121
        %v244 = vpop.permute.xlu0 %243
        %245 = vrot.lane.b32.xlu0 %v200, 121
        %v246 = vpop.permute.xlu0 %245
        %vm247 = vcmask 990208
        %v248 = vsel %vm247, %v244, %v246
        %vm250 = vcmask 1040384
        %v251 = vsel %vm250, %v191, %v206
        %vm252 = vcmask 1041408
        %v253 = vsel %vm252, %v251, %v213
        %vm254 = vcmask 1042432
        %v255 = vsel %vm254, %v253, %v220
        %vm256 = vcmask 1043456
        %v257 = vsel %vm256, %v255, %v227
        %vm258 = vcmask 1044480
        %v259 = vsel %vm258, %v257, %v234
        %vm260 = vcmask 1045504
        %v261 = vsel %vm260, %v259, %v241
        %vm262 = vcmask 1046528
        %v263 = vsel %vm262, %v261, %v248
        %v264 = vld [vmem:[#allocation5] sm:$0xff]
        %vm265 = vcmask 64512
        %v267 = vsel %vm265, %v264, 0
        %269 = vmatprep.subr.mxu0 0.0
        %270 = vmatpush1.msra.mxu0 0.0
        %271 = vmatprep.subr.mxu0 0.0
        %272 = vmatpush1.msra.mxu0 0.0
        %273 = vmatprep.subr.mxu0 0.0
        %274 = vmatpush1.msra.mxu0 0.0
        %275 = vmatprep.subr.mxu0 0.0
        %276 = vmatpush1.msra.mxu0 0.0
        %277 = vmatprep.subr.mxu0 0.0
        %278 = vmatpush1.msra.mxu0 0.0
        %279 = vmatprep.subr.mxu0 0.0
        %280 = vmatpush1.msra.mxu0 0.0
        %281 = vmatprep.subr.mxu0 0.0
        %282 = vmatpush1.msra.mxu0 0.0
        %283 = vmatprep.subr.mxu0 0.0
        %284 = vmatpush1.msra.mxu0 0.0
        %285 = vmatprep.subr.mxu0 0.0
        %286 = vmatpush1.msra.mxu0 0.0
        %287 = vmatprep.subr.mxu0 0.0
        %288 = vmatpush1.msra.mxu0 0.0
        %289 = vmatprep.subr.mxu0 0.0
        %290 = vmatpush1.msra.mxu0 0.0
        %291 = vmatprep.subr.mxu0 0.0
        %292 = vmatpush1.msra.mxu0 0.0
        %293 = vmatprep.subr.mxu0 0.0
        %294 = vmatpush1.msra.mxu0 0.0
        %295 = vmatprep.subr.mxu0 0.0
        %296 = vmatpush1.msra.mxu0 0.0
        %297 = vmatprep.subr.mxu0 0.0
        %298 = vmatpush1.msra.mxu0 0.0
        %299 = vmatprep.subr.mxu0 0.0
        %v300 = vand.u32 %v263, 4294901760
        %301 = vmatpush1.msra.mxu0 %v300
        %302 = vmatprep.subr.mxu0 0.0
        %303 = vmatpush2.msra.mxu0 0.0
        %304 = vmatprep.subr.mxu0 0.0
        %305 = vmatpush2.msra.mxu0 0.0
        %306 = vmatprep.subr.mxu0 0.0
        %307 = vmatpush2.msra.mxu0 0.0
        %308 = vmatprep.subr.mxu0 0.0
        %309 = vmatpush2.msra.mxu0 0.0
        %310 = vmatprep.subr.mxu0 0.0
        %311 = vmatpush2.msra.mxu0 0.0
        %312 = vmatprep.subr.mxu0 0.0
        %313 = vmatpush2.msra.mxu0 0.0
        %314 = vmatprep.subr.mxu0 0.0
        %315 = vmatpush2.msra.mxu0 0.0
        %316 = vmatprep.subr.mxu0 0.0
        %317 = vmatpush2.msra.mxu0 0.0
        %318 = vmatprep.subr.mxu0 0.0
        %319 = vmatpush2.msra.mxu0 0.0
        %320 = vmatprep.subr.mxu0 0.0
        %321 = vmatpush2.msra.mxu0 0.0
        %322 = vmatprep.subr.mxu0 0.0
        %323 = vmatpush2.msra.mxu0 0.0
        %324 = vmatprep.subr.mxu0 0.0
        %325 = vmatpush2.msra.mxu0 0.0
        %326 = vmatprep.subr.mxu0 0.0
        %327 = vmatpush2.msra.mxu0 0.0
        %328 = vmatprep.subr.mxu0 0.0
        %329 = vmatpush2.msra.mxu0 0.0
        %330 = vmatprep.subr.mxu0 0.0
        %331 = vmatpush2.msra.mxu0 0.0
        %332 = vmatprep.subr.mxu0 0.0
        %333 = vmatpush2.msra.mxu0 0.0
        %334 = vmatprep.mubr.f32.mxu0 0.0
        %v335 = vand.u32 %v267, 4294901760
        %v336 = vsub.f32 %v267, %v335
        %v337 = vand.u32 %v336, 4294901760
        %v338 = vsub.f32 %v336, %v337
        %v339 = vand.u32 %v338, 4294901760
        %340 = vmatmul.mubr.f32.gmra.mxu0 %v339
        %v341 = vpop.f32.mrf.mxu0
        %v342 = vadd.f32 0.0, %v341
        %v343 = vpop.f32.mrf.mxu0
        %344 = vdwg.mxu0
        %345 = vmatprep.subr.mxu0 0.0
        %346 = vmatpush1.msra.mxu0 0.0
        %347 = vmatprep.subr.mxu0 0.0
        %348 = vmatpush1.msra.mxu0 0.0
        %349 = vmatprep.subr.mxu0 0.0
        %350 = vmatpush1.msra.mxu0 0.0
        %351 = vmatprep.subr.mxu0 0.0
        %352 = vmatpush1.msra.mxu0 0.0
        %353 = vmatprep.subr.mxu0 0.0
        %354 = vmatpush1.msra.mxu0 0.0
        %355 = vmatprep.subr.mxu0 0.0
        %356 = vmatpush1.msra.mxu0 0.0
        %357 = vmatprep.subr.mxu0 0.0
        %358 = vmatpush1.msra.mxu0 0.0
        %359 = vmatprep.subr.mxu0 0.0
        %360 = vmatpush1.msra.mxu0 0.0
        %361 = vmatprep.subr.mxu0 0.0
        %362 = vmatpush1.msra.mxu0 0.0
        %363 = vmatprep.subr.mxu0 0.0
        %364 = vmatpush1.msra.mxu0 0.0
        %365 = vmatprep.subr.mxu0 0.0
        %366 = vmatpush1.msra.mxu0 0.0
        %367 = vmatprep.subr.mxu0 0.0
        %368 = vmatpush1.msra.mxu0 0.0
        %369 = vmatprep.subr.mxu0 0.0
        %370 = vmatpush1.msra.mxu0 0.0
        %371 = vmatprep.subr.mxu0 0.0
        %372 = vmatpush1.msra.mxu0 0.0
        %373 = vmatprep.subr.mxu0 0.0
        %374 = vmatpush1.msra.mxu0 0.0
        %375 = vmatprep.subr.mxu0 0.0
        %v376 = vand.u32 %v263, 4294901760
        %v377 = vsub.f32 %v263, %v376
        %v378 = vand.u32 %v377, 4294901760
        %v379 = vsub.f32 %v377, %v378
        %v380 = vand.u32 %v379, 4294901760
        %381 = vmatpush1.msra.mxu0 %v380
        %382 = vmatprep.subr.mxu0 0.0
        %383 = vmatpush2.msra.mxu0 0.0
        %384 = vmatprep.subr.mxu0 0.0
        %385 = vmatpush2.msra.mxu0 0.0
        %386 = vmatprep.subr.mxu0 0.0
        %387 = vmatpush2.msra.mxu0 0.0
        %388 = vmatprep.subr.mxu0 0.0
        %389 = vmatpush2.msra.mxu0 0.0
        %390 = vmatprep.subr.mxu0 0.0
        %391 = vmatpush2.msra.mxu0 0.0
        %392 = vmatprep.subr.mxu0 0.0
        %393 = vmatpush2.msra.mxu0 0.0
        %394 = vmatprep.subr.mxu0 0.0
        %395 = vmatpush2.msra.mxu0 0.0
        %396 = vmatprep.subr.mxu0 0.0
        %397 = vmatpush2.msra.mxu0 0.0
        %398 = vmatprep.subr.mxu0 0.0
        %399 = vmatpush2.msra.mxu0 0.0
        %400 = vmatprep.subr.mxu0 0.0
        %401 = vmatpush2.msra.mxu0 0.0
        %402 = vmatprep.subr.mxu0 0.0
        %403 = vmatpush2.msra.mxu0 0.0
        %404 = vmatprep.subr.mxu0 0.0
        %405 = vmatpush2.msra.mxu0 0.0
        %406 = vmatprep.subr.mxu0 0.0
        %407 = vmatpush2.msra.mxu0 0.0
        %408 = vmatprep.subr.mxu0 0.0
        %409 = vmatpush2.msra.mxu0 0.0
        %410 = vmatprep.subr.mxu0 0.0
        %411 = vmatpush2.msra.mxu0 0.0
        %412 = vmatprep.subr.mxu0 0.0
        %413 = vmatpush2.msra.mxu0 0.0
        %414 = vmatprep.mubr.f32.mxu0 0.0
        %v415 = vand.u32 %v267, 4294901760
        %416 = vmatmul.mubr.f32.gmra.mxu0 %v415
        %v417 = vpop.f32.mrf.mxu0
        %v418 = vadd.f32 %v342, %v417
        %v419 = vpop.f32.mrf.mxu0
        %420 = vdwg.mxu0
        %421 = vmatprep.subr.mxu0 0.0
        %422 = vmatpush1.msra.mxu0 0.0
        %423 = vmatprep.subr.mxu0 0.0
        %424 = vmatpush1.msra.mxu0 0.0
        %425 = vmatprep.subr.mxu0 0.0
        %426 = vmatpush1.msra.mxu0 0.0
        %427 = vmatprep.subr.mxu0 0.0
        %428 = vmatpush1.msra.mxu0 0.0
        %429 = vmatprep.subr.mxu0 0.0
        %430 = vmatpush1.msra.mxu0 0.0
        %431 = vmatprep.subr.mxu0 0.0
        %432 = vmatpush1.msra.mxu0 0.0
        %433 = vmatprep.subr.mxu0 0.0
        %434 = vmatpush1.msra.mxu0 0.0
        %435 = vmatprep.subr.mxu0 0.0
        %436 = vmatpush1.msra.mxu0 0.0
        %437 = vmatprep.subr.mxu0 0.0
        %438 = vmatpush1.msra.mxu0 0.0
        %439 = vmatprep.subr.mxu0 0.0
        %440 = vmatpush1.msra.mxu0 0.0
        %441 = vmatprep.subr.mxu0 0.0
        %442 = vmatpush1.msra.mxu0 0.0
        %443 = vmatprep.subr.mxu0 0.0
        %444 = vmatpush1.msra.mxu0 0.0
        %445 = vmatprep.subr.mxu0 0.0
        %446 = vmatpush1.msra.mxu0 0.0
        %447 = vmatprep.subr.mxu0 0.0
        %448 = vmatpush1.msra.mxu0 0.0
        %449 = vmatprep.subr.mxu0 0.0
        %450 = vmatpush1.msra.mxu0 0.0
        %451 = vmatprep.subr.mxu0 0.0
        %v452 = vand.u32 %v263, 4294901760
        %v453 = vsub.f32 %v263, %v452
        %454 = vmatpush1.msra.mxu0 %v453
        %455 = vmatprep.subr.mxu0 0.0
        %456 = vmatpush2.msra.mxu0 0.0
        %457 = vmatprep.subr.mxu0 0.0
        %458 = vmatpush2.msra.mxu0 0.0
        %459 = vmatprep.subr.mxu0 0.0
        %460 = vmatpush2.msra.mxu0 0.0
        %461 = vmatprep.subr.mxu0 0.0
        %462 = vmatpush2.msra.mxu0 0.0
        %463 = vmatprep.subr.mxu0 0.0
        %464 = vmatpush2.msra.mxu0 0.0
        %465 = vmatprep.subr.mxu0 0.0
        %466 = vmatpush2.msra.mxu0 0.0
        %467 = vmatprep.subr.mxu0 0.0
        %468 = vmatpush2.msra.mxu0 0.0
        %469 = vmatprep.subr.mxu0 0.0
        %470 = vmatpush2.msra.mxu0 0.0
        %471 = vmatprep.subr.mxu0 0.0
        %472 = vmatpush2.msra.mxu0 0.0
        %473 = vmatprep.subr.mxu0 0.0
        %474 = vmatpush2.msra.mxu0 0.0
        %475 = vmatprep.subr.mxu0 0.0
        %476 = vmatpush2.msra.mxu0 0.0
        %477 = vmatprep.subr.mxu0 0.0
        %478 = vmatpush2.msra.mxu0 0.0
        %479 = vmatprep.subr.mxu0 0.0
        %480 = vmatpush2.msra.mxu0 0.0
        %481 = vmatprep.subr.mxu0 0.0
        %482 = vmatpush2.msra.mxu0 0.0
        %483 = vmatprep.subr.mxu0 0.0
        %484 = vmatpush2.msra.mxu0 0.0
        %485 = vmatprep.subr.mxu0 0.0
        %486 = vmatpush2.msra.mxu0 0.0
        %487 = vmatprep.mubr.f32.mxu0 0.0
        %v488 = vand.u32 %v267, 4294901760
        %v489 = vsub.f32 %v267, %v488
        %490 = vmatmul.mubr.f32.gmra.mxu0 %v489
        %v491 = vpop.f32.mrf.mxu0
        %v492 = vadd.f32 %v418, %v491
        %v493 = vpop.f32.mrf.mxu0
        %494 = vdwg.mxu0
        %495 = vmatprep.subr.mxu0 0.0
        %496 = vmatpush1.msra.mxu0 0.0
        %497 = vmatprep.subr.mxu0 0.0
        %498 = vmatpush1.msra.mxu0 0.0
        %499 = vmatprep.subr.mxu0 0.0
        %500 = vmatpush1.msra.mxu0 0.0
        %501 = vmatprep.subr.mxu0 0.0
        %502 = vmatpush1.msra.mxu0 0.0
        %503 = vmatprep.subr.mxu0 0.0
        %504 = vmatpush1.msra.mxu0 0.0
        %505 = vmatprep.subr.mxu0 0.0
        %506 = vmatpush1.msra.mxu0 0.0
        %507 = vmatprep.subr.mxu0 0.0
        %508 = vmatpush1.msra.mxu0 0.0
        %509 = vmatprep.subr.mxu0 0.0
        %510 = vmatpush1.msra.mxu0 0.0
        %511 = vmatprep.subr.mxu0 0.0
        %512 = vmatpush1.msra.mxu0 0.0
        %513 = vmatprep.subr.mxu0 0.0
        %514 = vmatpush1.msra.mxu0 0.0
        %515 = vmatprep.subr.mxu0 0.0
        %516 = vmatpush1.msra.mxu0 0.0
        %517 = vmatprep.subr.mxu0 0.0
        %518 = vmatpush1.msra.mxu0 0.0
        %519 = vmatprep.subr.mxu0 0.0
        %520 = vmatpush1.msra.mxu0 0.0
        %521 = vmatprep.subr.mxu0 0.0
        %522 = vmatpush1.msra.mxu0 0.0
        %523 = vmatprep.subr.mxu0 0.0
        %524 = vmatpush1.msra.mxu0 0.0
        %525 = vmatprep.subr.mxu0 0.0
        %v526 = vand.u32 %v263, 4294901760
        %527 = vmatpush1.msra.mxu0 %v526
        %528 = vmatprep.subr.mxu0 0.0
        %529 = vmatpush2.msra.mxu0 0.0
        %530 = vmatprep.subr.mxu0 0.0
        %531 = vmatpush2.msra.mxu0 0.0
        %532 = vmatprep.subr.mxu0 0.0
        %533 = vmatpush2.msra.mxu0 0.0
        %534 = vmatprep.subr.mxu0 0.0
        %535 = vmatpush2.msra.mxu0 0.0
        %536 = vmatprep.subr.mxu0 0.0
        %537 = vmatpush2.msra.mxu0 0.0
        %538 = vmatprep.subr.mxu0 0.0
        %539 = vmatpush2.msra.mxu0 0.0
        %540 = vmatprep.subr.mxu0 0.0
        %541 = vmatpush2.msra.mxu0 0.0
        %542 = vmatprep.subr.mxu0 0.0
        %543 = vmatpush2.msra.mxu0 0.0
        %544 = vmatprep.subr.mxu0 0.0
        %545 = vmatpush2.msra.mxu0 0.0
        %546 = vmatprep.subr.mxu0 0.0
        %547 = vmatpush2.msra.mxu0 0.0
        %548 = vmatprep.subr.mxu0 0.0
        %549 = vmatpush2.msra.mxu0 0.0
        %550 = vmatprep.subr.mxu0 0.0
        %551 = vmatpush2.msra.mxu0 0.0
        %552 = vmatprep.subr.mxu0 0.0
        %553 = vmatpush2.msra.mxu0 0.0
        %554 = vmatprep.subr.mxu0 0.0
        %555 = vmatpush2.msra.mxu0 0.0
        %556 = vmatprep.subr.mxu0 0.0
        %557 = vmatpush2.msra.mxu0 0.0
        %558 = vmatprep.subr.mxu0 0.0
        %559 = vmatpush2.msra.mxu0 0.0
        %560 = vmatprep.mubr.f32.mxu0 0.0
        %v561 = vand.u32 %v267, 4294901760
        %v562 = vsub.f32 %v267, %v561
        %v563 = vand.u32 %v562, 4294901760
        %564 = vmatmul.mubr.f32.gmra.mxu0 %v563
        %v565 = vpop.f32.mrf.mxu0
        %v566 = vadd.f32 %v492, %v565
        %v567 = vpop.f32.mrf.mxu0
        %568 = vdwg.mxu0
        %569 = vmatprep.subr.mxu0 0.0
        %570 = vmatpush1.msra.mxu0 0.0
        %571 = vmatprep.subr.mxu0 0.0
        %572 = vmatpush1.msra.mxu0 0.0
        %573 = vmatprep.subr.mxu0 0.0
        %574 = vmatpush1.msra.mxu0 0.0
        %575 = vmatprep.subr.mxu0 0.0
        %576 = vmatpush1.msra.mxu0 0.0
        %577 = vmatprep.subr.mxu0 0.0
        %578 = vmatpush1.msra.mxu0 0.0
        %579 = vmatprep.subr.mxu0 0.0
        %580 = vmatpush1.msra.mxu0 0.0
        %581 = vmatprep.subr.mxu0 0.0
        %582 = vmatpush1.msra.mxu0 0.0
        %583 = vmatprep.subr.mxu0 0.0
        %584 = vmatpush1.msra.mxu0 0.0
        %585 = vmatprep.subr.mxu0 0.0
        %586 = vmatpush1.msra.mxu0 0.0
        %587 = vmatprep.subr.mxu0 0.0
        %588 = vmatpush1.msra.mxu0 0.0
        %589 = vmatprep.subr.mxu0 0.0
        %590 = vmatpush1.msra.mxu0 0.0
        %591 = vmatprep.subr.mxu0 0.0
        %592 = vmatpush1.msra.mxu0 0.0
        %593 = vmatprep.subr.mxu0 0.0
        %594 = vmatpush1.msra.mxu0 0.0
        %595 = vmatprep.subr.mxu0 0.0
        %596 = vmatpush1.msra.mxu0 0.0
        %597 = vmatprep.subr.mxu0 0.0
        %598 = vmatpush1.msra.mxu0 0.0
        %599 = vmatprep.subr.mxu0 0.0
        %v600 = vand.u32 %v263, 4294901760
        %v601 = vsub.f32 %v263, %v600
        %v602 = vand.u32 %v601, 4294901760
        %603 = vmatpush1.msra.mxu0 %v602
        %604 = vmatprep.subr.mxu0 0.0
        %605 = vmatpush2.msra.mxu0 0.0
        %606 = vmatprep.subr.mxu0 0.0
        %607 = vmatpush2.msra.mxu0 0.0
        %608 = vmatprep.subr.mxu0 0.0
        %609 = vmatpush2.msra.mxu0 0.0
        %610 = vmatprep.subr.mxu0 0.0
        %611 = vmatpush2.msra.mxu0 0.0
        %612 = vmatprep.subr.mxu0 0.0
        %613 = vmatpush2.msra.mxu0 0.0
        %614 = vmatprep.subr.mxu0 0.0
        %615 = vmatpush2.msra.mxu0 0.0
        %616 = vmatprep.subr.mxu0 0.0
        %617 = vmatpush2.msra.mxu0 0.0
        %618 = vmatprep.subr.mxu0 0.0
        %619 = vmatpush2.msra.mxu0 0.0
        %620 = vmatprep.subr.mxu0 0.0
        %621 = vmatpush2.msra.mxu0 0.0
        %622 = vmatprep.subr.mxu0 0.0
        %623 = vmatpush2.msra.mxu0 0.0
        %624 = vmatprep.subr.mxu0 0.0
        %625 = vmatpush2.msra.mxu0 0.0
        %626 = vmatprep.subr.mxu0 0.0
        %627 = vmatpush2.msra.mxu0 0.0
        %628 = vmatprep.subr.mxu0 0.0
        %629 = vmatpush2.msra.mxu0 0.0
        %630 = vmatprep.subr.mxu0 0.0
        %631 = vmatpush2.msra.mxu0 0.0
        %632 = vmatprep.subr.mxu0 0.0
        %633 = vmatpush2.msra.mxu0 0.0
        %634 = vmatprep.subr.mxu0 0.0
        %635 = vmatpush2.msra.mxu0 0.0
        %636 = vmatprep.mubr.f32.mxu0 0.0
        %v637 = vand.u32 %v267, 4294901760
        %638 = vmatmul.mubr.f32.gmra.mxu0 %v637
        %v639 = vpop.f32.mrf.mxu0
        %v640 = vadd.f32 %v566, %v639
        %v641 = vpop.f32.mrf.mxu0
        %642 = vdwg.mxu0
        %643 = vmatprep.subr.mxu0 0.0
        %644 = vmatpush1.msra.mxu0 0.0
        %645 = vmatprep.subr.mxu0 0.0
        %646 = vmatpush1.msra.mxu0 0.0
        %647 = vmatprep.subr.mxu0 0.0
        %648 = vmatpush1.msra.mxu0 0.0
        %649 = vmatprep.subr.mxu0 0.0
        %650 = vmatpush1.msra.mxu0 0.0
        %651 = vmatprep.subr.mxu0 0.0
        %652 = vmatpush1.msra.mxu0 0.0
        %653 = vmatprep.subr.mxu0 0.0
        %654 = vmatpush1.msra.mxu0 0.0
        %655 = vmatprep.subr.mxu0 0.0
        %656 = vmatpush1.msra.mxu0 0.0
        %657 = vmatprep.subr.mxu0 0.0
        %658 = vmatpush1.msra.mxu0 0.0
        %659 = vmatprep.subr.mxu0 0.0
        %660 = vmatpush1.msra.mxu0 0.0
        %661 = vmatprep.subr.mxu0 0.0
        %662 = vmatpush1.msra.mxu0 0.0
        %663 = vmatprep.subr.mxu0 0.0
        %664 = vmatpush1.msra.mxu0 0.0
        %665 = vmatprep.subr.mxu0 0.0
        %666 = vmatpush1.msra.mxu0 0.0
        %667 = vmatprep.subr.mxu0 0.0
        %668 = vmatpush1.msra.mxu0 0.0
        %669 = vmatprep.subr.mxu0 0.0
        %670 = vmatpush1.msra.mxu0 0.0
        %671 = vmatprep.subr.mxu0 0.0
        %672 = vmatpush1.msra.mxu0 0.0
        %673 = vmatprep.subr.mxu0 0.0
        %v674 = vand.u32 %v263, 4294901760
        %675 = vmatpush1.msra.mxu0 %v674
        %676 = vmatprep.subr.mxu0 0.0
        %677 = vmatpush2.msra.mxu0 0.0
        %678 = vmatprep.subr.mxu0 0.0
        %679 = vmatpush2.msra.mxu0 0.0
        %680 = vmatprep.subr.mxu0 0.0
        %681 = vmatpush2.msra.mxu0 0.0
        %682 = vmatprep.subr.mxu0 0.0
        %683 = vmatpush2.msra.mxu0 0.0
        %684 = vmatprep.subr.mxu0 0.0
        %685 = vmatpush2.msra.mxu0 0.0
        %686 = vmatprep.subr.mxu0 0.0
        %687 = vmatpush2.msra.mxu0 0.0
        %688 = vmatprep.subr.mxu0 0.0
        %689 = vmatpush2.msra.mxu0 0.0
        %690 = vmatprep.subr.mxu0 0.0
        %691 = vmatpush2.msra.mxu0 0.0
        %692 = vmatprep.subr.mxu0 0.0
        %693 = vmatpush2.msra.mxu0 0.0
        %694 = vmatprep.subr.mxu0 0.0
        %695 = vmatpush2.msra.mxu0 0.0
        %696 = vmatprep.subr.mxu0 0.0
        %697 = vmatpush2.msra.mxu0 0.0
        %698 = vmatprep.subr.mxu0 0.0
        %699 = vmatpush2.msra.mxu0 0.0
        %700 = vmatprep.subr.mxu0 0.0
        %701 = vmatpush2.msra.mxu0 0.0
        %702 = vmatprep.subr.mxu0 0.0
        %703 = vmatpush2.msra.mxu0 0.0
        %704 = vmatprep.subr.mxu0 0.0
        %705 = vmatpush2.msra.mxu0 0.0
        %706 = vmatprep.subr.mxu0 0.0
        %707 = vmatpush2.msra.mxu0 0.0
        %708 = vmatprep.mubr.f32.mxu0 0.0
        %v709 = vand.u32 %v267, 4294901760
        %710 = vmatmul.mubr.f32.gmra.mxu0 %v709
        %v711 = vpop.f32.mrf.mxu0
        %v712 = vadd.f32 %v640, %v711
        %v713 = vpop.f32.mrf.mxu0
        %714 = vdwg.mxu0
        %715 = vst [vmem:[%s186] sm:$0xff] %v712
        %s716 = sand.u32 %s89, 1
        %s717 = scalar_lea.sflag [#allocation4], %s716
        %s718 = sand.u32 %s89, 1
        %s719 = smul.addr %s718, 8
        %s720 = scalar_lea.vmem [#allocation7], %s719
        // Predicated region
        $region37: #{tpu_custom_call.1} parent=27 // pred_check
          %p721 = pneg %p99
        $region38: #{tpu_custom_call.1} parent=27 // pred_check_branch
          %723 = sbr.rel (%p721) target = $region40
        $region39: #{tpu_custom_call.1} parent=27 // pred_region
          %s725 = ssub.s32 128, 128
          %726 = vsyncadd %s717, %s725
          %s727 = smul.addr %s24, 3
          %s728 = sadd.s32 %s25, %s727
          %s729 = smul.addr %s728, 128
          %s730 = scalar_lea.hbm %s2, %s729
          %s732 = sshll.u32 %s720, 4
          %s733 = int_to_ptr.vmem [resolvable:$true] %s732
          %735 = dma.vmem_to_hbm [thread:$0]  %s733, 128, %s730, %s717
        $region40: #{tpu_custom_call.1} parent=27 // pred_fallthru
          _
      $region28: #{tpu_custom_call.1} parent=5 // pred_fallthru
        _
      %p736 = scmp.le.s32.totalorder 2, %s15
      // Predicated region
      $region41: #{tpu_custom_call.1} parent=5 // pred_check
        %p737 = pneg %p736
      $region42: #{tpu_custom_call.1} parent=5 // pred_check_branch
        %739 = sbr.rel (%p737) target = $region44
      $region43: #{tpu_custom_call.1} parent=5 // pred_region
        %s740 = ssub.s32 %s15, 2
        // Predicated region
        $region45: #{tpu_custom_call.1} parent=43 // pred_check
          %p741 = pneg %p105
        $region46: #{tpu_custom_call.1} parent=43 // pred_check_branch
          %743 = sbr.rel (%p741) target = $region48
        $region47: #{tpu_custom_call.1} parent=43 // pred_region
          %s744 = sand.u32 %s90, 1
          %s745 = scalar_lea.sflag [#allocation4], %s744
          %s746 = sand.u32 %s90, 1
          %s747 = smul.addr %s746, 8
          %s748 = scalar_lea.vmem [#allocation7], %s747
          %749 = dma.done %s745, 128
        $region48: #{tpu_custom_call.1} parent=43 // pred_fallthru
          _
      $region44: #{tpu_custom_call.1} parent=5 // pred_fallthru
        _
    $region6: #{tpu_custom_call.1} parent=1 // loop_footer
      %s19 = sadd.s32 1, %s15
    $region7: #{tpu_custom_call.1} parent=1 // loop_footer_branch
      %14 = sbr.rel target = $region3
    $region8: #{tpu_custom_call.1} parent=1 // loop_exit
      _
    %750 = vsyncpa [#allocation3], 1
    %s751 = scalar_lea.sflag [#allocation3], 1
    %752 = vsyncpa %s751, 1
    %753 = vsyncpa [#allocation6], 1
    %754 = vsyncpa [#allocation4], 1
    %s755 = scalar_lea.sflag [#allocation4], 1
    %756 = vsyncpa %s755, 1

</llo_original>
